<compile_context>
chip_gen: v7x
topology: tpu7x:2x2x1
jax: 0.10.0
libtpu: 0.0.40
codegen_flags: <defaults>
</compile_context>

<pallas_src>
import functools

import jax
import jax.numpy as jnp
from jax import lax
from jax.experimental import pallas as pl
from jax.experimental.pallas import tpu as pltpu


def _cdiv(a, b):
    return -(-a // b)


def _round_up(a, b):
    return _cdiv(a, b) * b


_VREG_BUDGET = 192 * 1024  # ~3/4 of the 256 KiB vreg file for the hot loop


def _pick_tiles(C):
    """Choose (CT, chunk): sublane (channel) tile and lane (spatial) chunk so
    that one loaded chunk plus two (CT, 128) f32 accumulators fit in vregs."""
    ct_cands = [C] + [c for c in (1024, 512, 256, 128, 64, 32, 16, 8)
                      if c < C and C % c == 0]
    for ct in ct_cands:
        for ch in (1024, 512, 256, 128):
            if ct * (ch + 2 * 128) * 4 <= _VREG_BUDGET:
                return ct, ch
    return ct_cands[-1], 128


def _vmem_budget_bytes():
    phys = 64 << 20  # conservative default: v7x TensorCore VMEM
    try:
        info = pltpu.get_tpu_info()
        phys = int(getattr(info, "vmem_capacity_bytes", phys) or phys)
    except Exception:
        pass
    # Never request the full physical VMEM; leave headroom for compiler scratch.
    return max(min(phys - (16 << 20), 96 << 20), 16 << 20)


def _channel_mlp_gate(avg, mmax, w1t, w2):
    """Shared MLP: sigmoid(W2 @ relu(W1 @ avg) + W2 @ relu(W1 @ mx)).
    avg, mmax: (C, 1) f32; w1t = W1^T: (C, Ch); w2: (C, Ch)."""
    def fc(p):
        h = jnp.sum(w1t * p, axis=0, keepdims=True)       # (1, Ch) sublane reduce
        h = jnp.maximum(h, 0.0)                            # ReLU
        return jnp.sum(w2 * h, axis=-1, keepdims=True)     # (C, 1) lane reduce
    return jax.nn.sigmoid(fc(avg) + fc(mmax))


def _accumulate_chunks(x_ref, row0, CT, chunk, n_chunks, s_init, m_init,
                       col_base, S, need_mask, unroll):
    """Accumulate per-channel sum/max of x_ref[0, row0:row0+CT, :n_chunks*chunk]
    into lane-partial (CT, 128) accumulators.  Per-chunk work is VALU-only;
    the cross-lane reduce is done once by the caller."""
    iota = (lax.broadcasted_iota(jnp.int32, (1, chunk), 1)
            if need_mask else None)

    def body(i, carry):
        sa, ma = carry
        start = pl.multiple_of(i * chunk, chunk)
        xc = x_ref[0, pl.ds(row0, CT), pl.ds(start, chunk)].astype(jnp.float32)
        if need_mask:
            valid = (col_base + start + iota) < S           # (1, chunk)
        for k in range(chunk // 128):
            sl = slice(k * 128, (k + 1) * 128)
            piece = xc[:, sl]
            sa = sa + piece                                 # pad is 0 -> sum ok
            if need_mask:
                piece = jnp.where(valid[:, sl], piece, -jnp.inf)
            ma = jnp.maximum(ma, piece)
        return sa, ma

    return lax.fori_loop(0, n_chunks, body, (s_init, m_init), unroll=unroll)


# --------------------------- fused single-pass kernel -----------------------
def _fused_kernel(x_ref, w1t_ref, w2_ref, o_ref, *, S, Sp, CT, chunk,
                  mul_dtype, unroll):
    # x_ref: (1, C, Sp) one sample, spatial flattened lane-dense (VMEM resident)
    # w1t_ref: (C, Ch) = W1^T ; w2_ref: (C, Ch) ; o_ref: (1, C, Sp)
    C = x_ref.shape[1]
    n_chunks = Sp // chunk
    need_mask = Sp != S
    inv_s = 1.0 / S

    # ---- pass 1 (VMEM reads): per-channel sum / max over the spatial axis --
    sums, maxs = [], []
    for t in range(C // CT):
        s0 = jnp.zeros((CT, 128), jnp.float32)
        m0 = jnp.full((CT, 128), -jnp.inf, jnp.float32)
        sa, ma = _accumulate_chunks(x_ref, t * CT, CT, chunk, n_chunks,
                                    s0, m0, 0, S, need_mask, unroll)
        sums.append(jnp.sum(sa, axis=-1, keepdims=True))    # (CT, 1)
        maxs.append(jnp.max(ma, axis=-1, keepdims=True))    # (CT, 1)
    ssum = sums[0] if len(sums) == 1 else jnp.concatenate(sums, axis=0)
    mmax = maxs[0] if len(maxs) == 1 else jnp.concatenate(maxs, axis=0)

    # ---- tiny channel MLP + sigmoid gate -----------------------------------
    gate = _channel_mlp_gate(ssum * inv_s, mmax, w1t_ref[...], w2_ref[...])
    gate = gate.astype(mul_dtype)                            # (C, 1)

    # ---- pass 2 (VMEM re-read): out = gate * x ------------------------------
    for t in range(C // CT):
        g = gate[t * CT:(t + 1) * CT, :]

        def mul_body(i, _, t=t, g=g):
            start = pl.multiple_of(i * chunk, chunk)
            xc = x_ref[0, pl.ds(t * CT, CT), pl.ds(start, chunk)].astype(mul_dtype)
            o_ref[0, pl.ds(t * CT, CT), pl.ds(start, chunk)] = (
                g * xc).astype(o_ref.dtype)
            return 0

        lax.fori_loop(0, n_chunks, mul_body, 0, unroll=unroll)


# --------------------------- tiled two-pass kernels -------------------------
def _reduce_gate_kernel(x_ref, w1t_ref, w2_ref, gate_ref, s_acc, m_acc, *,
                        S, Sp, TS, CT, chunk, unroll):
    # grid = (N, n_tiles); S-tile axis is the (arbitrary) reduction axis.
    s = pl.program_id(1)
    C = x_ref.shape[1]
    n_chunks = TS // chunk
    need_mask = Sp != S
    inv_s = 1.0 / S

    @pl.when(s == 0)
    def _():
        s_acc[...] = jnp.zeros_like(s_acc)
        m_acc[...] = jnp.full_like(m_acc, -jnp.inf)

    col_base = s * TS
    for t in range(C // CT):
        rows = pl.ds(t * CT, CT)
        sa, ma = _accumulate_chunks(x_ref, t * CT, CT, chunk, n_chunks,
                                    s_acc[rows, :], m_acc[rows, :],
                                    col_base, S, need_mask, unroll)
        s_acc[rows, :] = sa
        m_acc[rows, :] = ma

    @pl.when(s == pl.num_programs(1) - 1)
    def _():
        ssum = jnp.sum(s_acc[...], axis=-1, keepdims=True)   # (C, 1)
        mmax = jnp.max(m_acc[...], axis=-1, keepdims=True)   # (C, 1)
        gate_ref[0, :, :] = _channel_mlp_gate(ssum * inv_s, mmax,
                                              w1t_ref[...], w2_ref[...])


def _apply_gate_kernel(x_ref, gate_ref, o_ref, *, CT, chunk, mul_dtype, unroll):
    C = x_ref.shape[1]
    TS = x_ref.shape[2]
    n_chunks = TS // chunk
    gate = gate_ref[0, :, :].astype(mul_dtype)                # (C, 1)
    for t in range(C // CT):
        g = gate[t * CT:(t + 1) * CT, :]

        def mul_body(i, _, t=t, g=g):
            start = pl.multiple_of(i * chunk, chunk)
            xc = x_ref[0, pl.ds(t * CT, CT), pl.ds(start, chunk)].astype(mul_dtype)
            o_ref[0, pl.ds(t * CT, CT), pl.ds(start, chunk)] = (
                g * xc).astype(o_ref.dtype)
            return 0

        lax.fori_loop(0, n_chunks, mul_body, 0, unroll=unroll)


# --------------------------------- wrapper ----------------------------------
def channel_attention(x, w1, w2, *, force_tiled=False):
    """x: (N, C, D, H, W); w1: (C//r, C, 1, 1, 1); w2: (C, C//r, 1, 1, 1)."""
    N, C, D, H, W = x.shape
    S = D * H * W
    Ch = w1.shape[0]
    itemsize = x.dtype.itemsize

    # Lane-dense layout; fc[0] weight pre-transposed (no in-kernel relayouts).
    x_flat = x.reshape(N, C, S)
    w1t = jnp.transpose(w1[..., 0, 0, 0], (1, 0)).astype(jnp.float32)  # (C, Ch)
    w2m = w2[..., 0, 0, 0].astype(jnp.float32)                          # (C, Ch)
    w_bytes = 2 * C * Ch * 4

    # v5e has no bf16 VALU (upcast mandatory there); on v6e/v7x the bf16
    # multiply halves vreg/VMEM traffic of the gating pass.
    mul_dtype = jnp.bfloat16 if x.dtype == jnp.bfloat16 else jnp.float32

    CT, chunk = _pick_tiles(C)
    budget = _vmem_budget_bytes()

    # ----------------- fused path: one grid step per sample -----------------
    Sp = _round_up(S, 128)
    chunk_f = chunk
    while Sp % chunk_f:
        chunk_f //= 2                       # 128 always divides Sp
    block_bytes = C * Sp * itemsize
    fused_need = 4 * block_bytes + 2 * w_bytes + (2 << 20)  # dbl-buffered in+out

    # TODO(synk): also auto-select the two-pass path when N < number of
    # TensorCores (v7x megacore) so both cores get work at N == 1.
    if not force_tiled and fused_need <= budget:
        xp = x_flat if Sp == S else jnp.pad(x_flat, ((0, 0), (0, 0), (0, Sp - S)))
        n_chunks = Sp // chunk_f
        unroll = int(max(1, min(8, n_chunks)))
        out = pl.pallas_call(
            functools.partial(_fused_kernel, S=S, Sp=Sp, CT=CT, chunk=chunk_f,
                              mul_dtype=mul_dtype, unroll=unroll),
            out_shape=jax.ShapeDtypeStruct((N, C, Sp), x.dtype),
            grid=(N,),
            in_specs=[
                pl.BlockSpec((1, C, Sp), lambda n: (n, 0, 0)),
                pl.BlockSpec((C, Ch), lambda n: (0, 0)),
                pl.BlockSpec((C, Ch), lambda n: (0, 0)),
            ],
            out_specs=pl.BlockSpec((1, C, Sp), lambda n: (n, 0, 0)),
            compiler_params=pltpu.CompilerParams(
                dimension_semantics=("parallel",),
                vmem_limit_bytes=int(min(budget, fused_need)),
            ),
        )(xp, w1t, w2m)
        out = out[:, :, :S] if Sp != S else out
        return out.reshape(N, C, D, H, W)

    # --------- tiled two-pass path (block too big for VMEM / forced) --------
    misc = 2 * w_bytes + (4 << 20)
    max_block = max((budget - misc) // 4, C * chunk * itemsize)
    m = int(max(1, min(max_block // (C * chunk * itemsize), _cdiv(S, chunk))))
    TS = chunk * m
    Sp = _round_up(S, TS)
    n_tiles = Sp // TS
    xp = x_flat if Sp == S else jnp.pad(x_flat, ((0, 0), (0, 0), (0, Sp - S)))
    n_chunks = TS // chunk
    unroll = int(max(1, min(8, n_chunks)))
    block_bytes = C * TS * itemsize
    scratch_bytes = 2 * C * 128 * 4

    # Pass 1: S-tiled reduction -> per-sample channel gate (N, C, 1).
    gate = pl.pallas_call(
        functools.partial(_reduce_gate_kernel, S=S, Sp=Sp, TS=TS, CT=CT,
                          chunk=chunk, unroll=unroll),
        out_shape=jax.ShapeDtypeStruct((N, C, 1), jnp.float32),
        grid=(N, n_tiles),
        in_specs=[
            pl.BlockSpec((1, C, TS), lambda n, s: (n, 0, s)),
            pl.BlockSpec((C, Ch), lambda n, s: (0, 0)),
            pl.BlockSpec((C, Ch), lambda n, s: (0, 0)),
        ],
        out_specs=pl.BlockSpec((1, C, 1), lambda n, s: (n, 0, 0)),
        scratch_shapes=[pltpu.VMEM((C, 128), jnp.float32),
                        pltpu.VMEM((C, 128), jnp.float32)],
        compiler_params=pltpu.CompilerParams(
            dimension_semantics=("parallel", "arbitrary"),
            vmem_limit_bytes=int(min(budget,
                                     2 * block_bytes + scratch_bytes + misc)),
        ),
    )(xp, w1t, w2m)

    # Pass 2: trivially parallel apply: out = gate * x.
    out = pl.pallas_call(
        functools.partial(_apply_gate_kernel, CT=CT, chunk=chunk,
                          mul_dtype=mul_dtype, unroll=unroll),
        out_shape=jax.ShapeDtypeStruct((N, C, Sp), x.dtype),
        grid=(N, n_tiles),
        in_specs=[
            pl.BlockSpec((1, C, TS), lambda n, s: (n, 0, s)),
            pl.BlockSpec((1, C, 1), lambda n, s: (n, 0, 0)),
        ],
        out_specs=pl.BlockSpec((1, C, TS), lambda n, s: (n, 0, s)),
        compiler_params=pltpu.CompilerParams(
            dimension_semantics=("parallel", "parallel"),
            vmem_limit_bytes=int(min(budget, 4 * block_bytes + (4 << 20))),
        ),
    )(xp, gate)

    out = out[:, :, :S] if Sp != S else out
    return out.reshape(N, C, D, H, W)


# --------------------------------- self test --------------------------------
def _reference(x, w1, w2):
    """Pure-JAX reference matching the PyTorch forward (computed in f32)."""
    xf = x.astype(jnp.float32)
    avg = jnp.mean(xf, axis=(2, 3, 4))                      # (N, C)
    mx = jnp.max(xf, axis=(2, 3, 4))                        # (N, C)
    W1 = w1[..., 0, 0, 0].astype(jnp.float32)               # (Ch, C)
    W2 = w2[..., 0, 0, 0].astype(jnp.float32)               # (C, Ch)

    def fc(p):
        h = jnp.maximum(p @ W1.T, 0.0)
        return h @ W2.T

    gate = jax.nn.sigmoid(fc(avg) + fc(mx))[:, :, None, None, None]
    return gate * xf


if __name__ == "__main__":
    key = jax.random.PRNGKey(0)
    kx, k1, k2 = jax.random.split(key, 3)

    C, reduction = 32, 16
    Ch = C // reduction
    w1 = jax.random.normal(k1, (Ch, C, 1, 1, 1), jnp.float32) / jnp.sqrt(float(C))
    w2 = jax.random.normal(k2, (C, Ch, 1, 1, 1), jnp.float32) / jnp.sqrt(float(Ch))

    cases = [
        # (shape, dtype, force_tiled, atol)
        ((2, C, 8, 16, 16), jnp.float32, False, 1e-4),   # fused, S % 128 == 0
        ((1, C, 5, 6, 7), jnp.float32, False, 1e-4),     # fused, padded/masked tail
        ((2, C, 4, 8, 8), jnp.float32, True, 1e-4),      # two-pass S-tiled path
        ((2, C, 8, 16, 16), jnp.bfloat16, False, 5e-2),  # bf16 gating multiply
    ]

    ok = True
    for i, (shape, dtype, tiled, atol) in enumerate(cases):
        xk = jax.random.fold_in(kx, i)
        x = jax.random.normal(xk, shape, jnp.float32).astype(dtype)
        out = channel_attention(x, w1, w2, force_tiled=tiled)
        jax.block_until_ready(out)
        ref = _reference(x, w1, w2)
        err = float(jnp.max(jnp.abs(out.astype(jnp.float32) - ref)))
        if not err <= atol:
            ok = False
            print(f"case {i}: max abs err {err} > {atol}")

    if not ok:
        raise AssertionError("ChannelAttention Pallas kernel mismatch")
    print("KERNEL_OK")
</pallas_src>

<mosaic_0001>
module attributes {stable_mosaic.version = 11 : i64} {
  func.func @_fused_kernel(%arg0: i32, %arg1: memref<1x32x2048xf32, #tpu.memory_space<vmem>>, %arg2: memref<32x2xf32, #tpu.memory_space<vmem>>, %arg3: memref<32x2xf32, #tpu.memory_space<vmem>>, %arg4: memref<1x32x2048xf32, #tpu.memory_space<vmem>>) attributes {dimension_semantics = [#tpu.dimension_semantics<parallel>], iteration_bounds = array<i64: 2>, scalar_prefetch = 0 : i64, scratch_operands = 0 : i64, tpu.core_type = #tpu.core_type<tc>, window_params = [{transform_indices = @transform_0, window_bounds = array<i64: 1, 32, 2048>}, {pipeline_mode = #tpu.pipeline_mode<synchronous>, transform_indices = @transform_1, window_bounds = array<i64: 32, 2>}, {pipeline_mode = #tpu.pipeline_mode<synchronous>, transform_indices = @transform_2, window_bounds = array<i64: 32, 2>}, {transform_indices = @transform_3, window_bounds = array<i64: 1, 32, 2048>}]} {
    %cst = arith.constant 0.000000e+00 : f32
    %0 = vector.broadcast %cst : f32 to vector<32x128xf32>
    %cst_0 = arith.constant 0xFF800000 : f32
    %1 = vector.broadcast %cst_0 : f32 to vector<32x128xf32>
    %c0_i32 = arith.constant 0 : i32
    %c1024_i32 = arith.constant 1024 : i32
    %2 = arith.muli %c0_i32, %c1024_i32 : i32
    %3 = tpu.assume_multiple %2, 1024 : i32
    %c0 = arith.constant 0 : index
    %c0_1 = arith.constant 0 : index
    %4 = arith.index_cast %3 : i32 to index
    %5 = vector.load %arg1[%c0, %c0_1, %4] : memref<1x32x2048xf32, #tpu.memory_space<vmem>>, vector<1x32x1024xf32>
    %6 = vector.shape_cast %5 : vector<1x32x1024xf32> to vector<32x1024xf32>
    %7 = vector.extract_strided_slice %6 {offsets = [0, 0], sizes = [32, 128], strides = [1, 1]} : vector<32x1024xf32> to vector<32x128xf32>
    %8 = arith.addf %0, %7 : vector<32x128xf32>
    %9 = arith.maximumf %1, %7 : vector<32x128xf32>
    %10 = vector.extract_strided_slice %6 {offsets = [0, 128], sizes = [32, 128], strides = [1, 1]} : vector<32x1024xf32> to vector<32x128xf32>
    %11 = arith.addf %8, %10 : vector<32x128xf32>
    %12 = arith.maximumf %9, %10 : vector<32x128xf32>
    %13 = vector.extract_strided_slice %6 {offsets = [0, 256], sizes = [32, 128], strides = [1, 1]} : vector<32x1024xf32> to vector<32x128xf32>
    %14 = arith.addf %11, %13 : vector<32x128xf32>
    %15 = arith.maximumf %12, %13 : vector<32x128xf32>
    %16 = vector.extract_strided_slice %6 {offsets = [0, 384], sizes = [32, 128], strides = [1, 1]} : vector<32x1024xf32> to vector<32x128xf32>
    %17 = arith.addf %14, %16 : vector<32x128xf32>
    %18 = arith.maximumf %15, %16 : vector<32x128xf32>
    %19 = vector.extract_strided_slice %6 {offsets = [0, 512], sizes = [32, 128], strides = [1, 1]} : vector<32x1024xf32> to vector<32x128xf32>
    %20 = arith.addf %17, %19 : vector<32x128xf32>
    %21 = arith.maximumf %18, %19 : vector<32x128xf32>
    %22 = vector.extract_strided_slice %6 {offsets = [0, 640], sizes = [32, 128], strides = [1, 1]} : vector<32x1024xf32> to vector<32x128xf32>
    %23 = arith.addf %20, %22 : vector<32x128xf32>
    %24 = arith.maximumf %21, %22 : vector<32x128xf32>
    %25 = vector.extract_strided_slice %6 {offsets = [0, 768], sizes = [32, 128], strides = [1, 1]} : vector<32x1024xf32> to vector<32x128xf32>
    %26 = arith.addf %23, %25 : vector<32x128xf32>
    %27 = arith.maximumf %24, %25 : vector<32x128xf32>
    %28 = vector.extract_strided_slice %6 {offsets = [0, 896], sizes = [32, 128], strides = [1, 1]} : vector<32x1024xf32> to vector<32x128xf32>
    %29 = arith.addf %26, %28 : vector<32x128xf32>
    %30 = arith.maximumf %27, %28 : vector<32x128xf32>
    %c1_i32 = arith.constant 1 : i32
    %c1024_i32_2 = arith.constant 1024 : i32
    %31 = arith.muli %c1_i32, %c1024_i32_2 : i32
    %32 = tpu.assume_multiple %31, 1024 : i32
    %c0_3 = arith.constant 0 : index
    %c0_4 = arith.constant 0 : index
    %33 = arith.index_cast %32 : i32 to index
    %34 = vector.load %arg1[%c0_3, %c0_4, %33] : memref<1x32x2048xf32, #tpu.memory_space<vmem>>, vector<1x32x1024xf32>
    %35 = vector.shape_cast %34 : vector<1x32x1024xf32> to vector<32x1024xf32>
    %36 = vector.extract_strided_slice %35 {offsets = [0, 0], sizes = [32, 128], strides = [1, 1]} : vector<32x1024xf32> to vector<32x128xf32>
    %37 = arith.addf %29, %36 : vector<32x128xf32>
    %38 = arith.maximumf %30, %36 : vector<32x128xf32>
    %39 = vector.extract_strided_slice %35 {offsets = [0, 128], sizes = [32, 128], strides = [1, 1]} : vector<32x1024xf32> to vector<32x128xf32>
    %40 = arith.addf %37, %39 : vector<32x128xf32>
    %41 = arith.maximumf %38, %39 : vector<32x128xf32>
    %42 = vector.extract_strided_slice %35 {offsets = [0, 256], sizes = [32, 128], strides = [1, 1]} : vector<32x1024xf32> to vector<32x128xf32>
    %43 = arith.addf %40, %42 : vector<32x128xf32>
    %44 = arith.maximumf %41, %42 : vector<32x128xf32>
    %45 = vector.extract_strided_slice %35 {offsets = [0, 384], sizes = [32, 128], strides = [1, 1]} : vector<32x1024xf32> to vector<32x128xf32>
    %46 = arith.addf %43, %45 : vector<32x128xf32>
    %47 = arith.maximumf %44, %45 : vector<32x128xf32>
    %48 = vector.extract_strided_slice %35 {offsets = [0, 512], sizes = [32, 128], strides = [1, 1]} : vector<32x1024xf32> to vector<32x128xf32>
    %49 = arith.addf %46, %48 : vector<32x128xf32>
    %50 = arith.maximumf %47, %48 : vector<32x128xf32>
    %51 = vector.extract_strided_slice %35 {offsets = [0, 640], sizes = [32, 128], strides = [1, 1]} : vector<32x1024xf32> to vector<32x128xf32>
    %52 = arith.addf %49, %51 : vector<32x128xf32>
    %53 = arith.maximumf %50, %51 : vector<32x128xf32>
    %54 = vector.extract_strided_slice %35 {offsets = [0, 768], sizes = [32, 128], strides = [1, 1]} : vector<32x1024xf32> to vector<32x128xf32>
    %55 = arith.addf %52, %54 : vector<32x128xf32>
    %56 = arith.maximumf %53, %54 : vector<32x128xf32>
    %57 = vector.extract_strided_slice %35 {offsets = [0, 896], sizes = [32, 128], strides = [1, 1]} : vector<32x1024xf32> to vector<32x128xf32>
    %58 = arith.addf %55, %57 : vector<32x128xf32>
    %59 = arith.maximumf %56, %57 : vector<32x128xf32>
    %c2_i32 = arith.constant 2 : i32
    %cst_5 = arith.constant dense<0.000000e+00> : vector<32xf32>
    %60 = vector.multi_reduction <add>, %58, %cst_5 [1] : vector<32x128xf32> to vector<32xf32>
    %61 = vector.shape_cast %60 : vector<32xf32> to vector<32x1xf32>
    %cst_6 = arith.constant dense<0xFF800000> : vector<32xf32>
    %62 = vector.multi_reduction <maximumf>, %59, %cst_6 [1] : vector<32x128xf32> to vector<32xf32>
    %63 = vector.shape_cast %62 : vector<32xf32> to vector<32x1xf32>
    %cst_7 = arith.constant 4.8828125E-4 : f32
    %64 = vector.broadcast %cst_7 : f32 to vector<32x1xf32>
    %65 = arith.mulf %61, %64 : vector<32x1xf32>
    %c0_8 = arith.constant 0 : index
    %c0_9 = arith.constant 0 : index
    %66 = vector.load %arg2[%c0_8, %c0_9] : memref<32x2xf32, #tpu.memory_space<vmem>>, vector<32x2xf32>
    %c0_10 = arith.constant 0 : index
    %c0_11 = arith.constant 0 : index
    %67 = vector.load %arg3[%c0_10, %c0_11] : memref<32x2xf32, #tpu.memory_space<vmem>>, vector<32x2xf32>
    %68 = vector.broadcast %65 : vector<32x1xf32> to vector<32x2xf32>
    %69 = arith.mulf %66, %68 : vector<32x2xf32>
    %cst_12 = arith.constant dense<0.000000e+00> : vector<2xf32>
    %70 = vector.multi_reduction <add>, %69, %cst_12 [0] : vector<32x2xf32> to vector<2xf32>
    %71 = vector.shape_cast %70 : vector<2xf32> to vector<1x2xf32>
    %cst_13 = arith.constant 0.000000e+00 : f32
    %72 = vector.broadcast %cst_13 : f32 to vector<1x2xf32>
    %73 = arith.maximumf %71, %72 : vector<1x2xf32>
    %74 = vector.broadcast %73 : vector<1x2xf32> to vector<32x2xf32>
    %75 = arith.mulf %67, %74 : vector<32x2xf32>
    %cst_14 = arith.constant dense<0.000000e+00> : vector<32xf32>
    %76 = vector.multi_reduction <add>, %75, %cst_14 [1] : vector<32x2xf32> to vector<32xf32>
    %77 = vector.shape_cast %76 : vector<32xf32> to vector<32x1xf32>
    %78 = vector.broadcast %63 : vector<32x1xf32> to vector<32x2xf32>
    %79 = arith.mulf %66, %78 : vector<32x2xf32>
    %cst_15 = arith.constant dense<0.000000e+00> : vector<2xf32>
    %80 = vector.multi_reduction <add>, %79, %cst_15 [0] : vector<32x2xf32> to vector<2xf32>
    %81 = vector.shape_cast %80 : vector<2xf32> to vector<1x2xf32>
    %cst_16 = arith.constant 0.000000e+00 : f32
    %82 = vector.broadcast %cst_16 : f32 to vector<1x2xf32>
    %83 = arith.maximumf %81, %82 : vector<1x2xf32>
    %84 = vector.broadcast %83 : vector<1x2xf32> to vector<32x2xf32>
    %85 = arith.mulf %67, %84 : vector<32x2xf32>
    %cst_17 = arith.constant dense<0.000000e+00> : vector<32xf32>
    %86 = vector.multi_reduction <add>, %85, %cst_17 [1] : vector<32x2xf32> to vector<32xf32>
    %87 = vector.shape_cast %86 : vector<32xf32> to vector<32x1xf32>
    %88 = arith.addf %77, %87 : vector<32x1xf32>
    %89 = arith.negf %88 : vector<32x1xf32>
    %90 = math.exp %89 : vector<32x1xf32>
    %cst_18 = arith.constant 1.000000e+00 : f32
    %91 = vector.broadcast %cst_18 : f32 to vector<32x1xf32>
    %92 = arith.addf %91, %90 : vector<32x1xf32>
    %93 = arith.divf %91, %92 : vector<32x1xf32>
    %c0_i32_19 = arith.constant 0 : i32
    %c1024_i32_20 = arith.constant 1024 : i32
    %94 = arith.muli %c0_i32_19, %c1024_i32_20 : i32
    %95 = tpu.assume_multiple %94, 1024 : i32
    %c0_21 = arith.constant 0 : index
    %c0_22 = arith.constant 0 : index
    %96 = arith.index_cast %95 : i32 to index
    %97 = vector.load %arg1[%c0_21, %c0_22, %96] : memref<1x32x2048xf32, #tpu.memory_space<vmem>>, vector<1x32x1024xf32>
    %98 = vector.shape_cast %97 : vector<1x32x1024xf32> to vector<32x1024xf32>
    %99 = vector.broadcast %93 : vector<32x1xf32> to vector<32x1024xf32>
    %100 = arith.mulf %99, %98 : vector<32x1024xf32>
    %c0_23 = arith.constant 0 : index
    %c0_24 = arith.constant 0 : index
    %101 = arith.index_cast %95 : i32 to index
    %102 = vector.load %arg4[%c0_23, %c0_24, %101] : memref<1x32x2048xf32, #tpu.memory_space<vmem>>, vector<1x32x1024xf32>
    %103 = vector.shape_cast %102 : vector<1x32x1024xf32> to vector<32x1024xf32>
    %104 = vector.shape_cast %100 : vector<32x1024xf32> to vector<1x32x1024xf32>
    tpu.vector_store %arg4[%c0_23, %c0_24, %101], %104 {strides = array<i32>} : memref<1x32x2048xf32, #tpu.memory_space<vmem>>, vector<1x32x1024xf32>,
    %c1_i32_25 = arith.constant 1 : i32
    %c1024_i32_26 = arith.constant 1024 : i32
    %105 = arith.muli %c1_i32_25, %c1024_i32_26 : i32
    %106 = tpu.assume_multiple %105, 1024 : i32
    %c0_27 = arith.constant 0 : index
    %c0_28 = arith.constant 0 : index
    %107 = arith.index_cast %106 : i32 to index
    %108 = vector.load %arg1[%c0_27, %c0_28, %107] : memref<1x32x2048xf32, #tpu.memory_space<vmem>>, vector<1x32x1024xf32>
    %109 = vector.shape_cast %108 : vector<1x32x1024xf32> to vector<32x1024xf32>
    %110 = vector.broadcast %93 : vector<32x1xf32> to vector<32x1024xf32>
    %111 = arith.mulf %110, %109 : vector<32x1024xf32>
    %c0_29 = arith.constant 0 : index
    %c0_30 = arith.constant 0 : index
    %112 = arith.index_cast %106 : i32 to index
    %113 = vector.load %arg4[%c0_29, %c0_30, %112] : memref<1x32x2048xf32, #tpu.memory_space<vmem>>, vector<1x32x1024xf32>
    %114 = vector.shape_cast %113 : vector<1x32x1024xf32> to vector<32x1024xf32>
    %115 = vector.shape_cast %111 : vector<32x1024xf32> to vector<1x32x1024xf32>
    tpu.vector_store %arg4[%c0_29, %c0_30, %112], %115 {strides = array<i32>} : memref<1x32x2048xf32, #tpu.memory_space<vmem>>, vector<1x32x1024xf32>,
    %c2_i32_31 = arith.constant 2 : i32
    return
  }
  func.func @transform_0(%arg0: i32) -> (i32, i32, i32) {
    %c0_i32 = arith.constant 0 : i32
    %c0_i32_0 = arith.constant 0 : i32
    %c0_i32_1 = arith.constant 0 : i32
    return %arg0, %c0_i32, %c0_i32_0 : i32, i32, i32
  }
  func.func @transform_1(%arg0: i32) -> (i32, i32) {
    %c0_i32 = arith.constant 0 : i32
    %c0_i32_0 = arith.constant 0 : i32
    %c0_i32_1 = arith.constant 0 : i32
    return %c0_i32, %c0_i32_0 : i32, i32
  }
  func.func @transform_2(%arg0: i32) -> (i32, i32) {
    %c0_i32 = arith.constant 0 : i32
    %c0_i32_0 = arith.constant 0 : i32
    %c0_i32_1 = arith.constant 0 : i32
    return %c0_i32, %c0_i32_0 : i32, i32
  }
  func.func @transform_3(%arg0: i32) -> (i32, i32, i32) {
    %c0_i32 = arith.constant 0 : i32
    %c0_i32_0 = arith.constant 0 : i32
    %c0_i32_1 = arith.constant 0 : i32
    return %arg0, %c0_i32, %c0_i32_0 : i32, i32, i32
  }
}

</mosaic_0001>

<llo_original>
// kernel: tpu_custom_call.1
$region0: #{tpu_custom_call.1}
  #allocation0 [shape = 'u32[]', space=smem, size = 0x4, offset = 0x4, fixed_abs, tag = 'smem constant byte address 0x4 - core index']
  #allocation1 [shape = 'u32[144,128]{1,0:T(1,128)}', space=vmem, size = 0x12000, scoped, tag = 'internal scratch']
  %s0 = inlined_call_operand.hbm [shape: f32[2,32,2048], index: 0, kind: input, shape index: {}]
  %s1 = inlined_call_operand.vmem [shape: f32[32,2], index: 1, kind: input, shape index: {}]
  %s2 = inlined_call_operand.vmem [shape: f32[32,2], index: 2, kind: input, shape index: {}]
  %s3 = inlined_call_operand.hbm [shape: f32[2,32,2048], index: 3, kind: output, shape index: {}]
  %s4 = sld [smem:[#allocation0]]
  $region49: #{tpu_custom_call.1} parent=0
    _
  %s6 = ssub.s32 1, %s4
  %s7 = scalar_select 0, %s6, %s4
  $region1: #{tpu_custom_call.1} parent=0
    #allocation2 [shape = 'u8[524288]{0}', space=vmem, size = 0x80000, scoped, tag = 'input window, operand 0']
    #allocation3 [shape = 's32[2]{0}', space=sflag, size = 0x8, scoped, tag = 'scoped memory for tpu_custom_call.1']
    #allocation4 [shape = 's32[2]{0}', space=sflag, size = 0x8, scoped, tag = 'scoped memory for tpu_custom_call.1']
    #allocation5 [shape = 'u8[524288]{0}', space=vmem, size = 0x80000, scoped, tag = 'output window, operand 0']
    %8 = vsyncpa [#allocation3], 0
    %s9 = scalar_lea.sflag [#allocation3], 1
    %10 = vsyncpa %s9, 0
    %11 = vsyncpa [#allocation4], 0
    %s12 = scalar_lea.sflag [#allocation4], 1
    %13 = vsyncpa %s12, 0
    loop: start=0, step=1, limit=4
    $region2: #{tpu_custom_call.1} parent=1 // loop_pre_header
      _
    $region3: #{tpu_custom_call.1} parent=1 // loop_header
      %s15 = sphi 0, %s19
      %p16 = scmp.ge.s32.totalorder %s15, 4
      %s25 = sphi 0, %s27
      %s28 = sphi 0, %s25
      %s29 = sphi 0, %s28
      %s45 = sphi 0, %s29
      %s49 = sphi 0, %s49
      %s51 = sphi 0, %s49
      %s52 = sphi 0, %s51
      %s66 = sphi 0, %s52
      %s70 = sphi 0, %s70
      %s72 = sphi 0, %s70
      %s73 = sphi 0, %s72
      %s87 = sphi 0, %s73
      %s93 = sphi 0, %s95
      %s96 = sphi 0, %s93
      %s97 = sphi 0, %s96
      %s113 = sphi 0, %s97
    $region4: #{tpu_custom_call.1} parent=1 // loop_header_branch
      %18 = sbr.rel (%p16) target = $region8
    $region5: #{tpu_custom_call.1} parent=1 // loop_body
      %s20 = ssub.s32 %s15, 1
      %s21 = ssub.s32 %s15, 2
      %s22 = sadd.s32 %s15, 1
      %s23 = ssub.s32 %s15, %s22
      %p24 = scmp.eq.s32.totalorder %s23, 0
      %s26 = sadd.s32 %s25, 1
      %s27 = scalar_select %p24, %s25, %s26
      %p30 = pneg %p24
      %p31 = scmp.eq.s32.totalorder %s15, 1
      %p32 = por %p30, %p31
      %p33 = scmp.ne.s32.totalorder %s25, %s28
      %p34 = scmp.eq.s32.totalorder %s15, 0
      %p35 = por %p33, %p34
      %p36 = scmp.ne.s32.totalorder %s25, %s28
      %p37 = scmp.eq.s32.totalorder %s20, 1
      %p38 = por %p36, %p37
      %p39 = scmp.ne.s32.totalorder %s28, %s29
      %p40 = scmp.eq.s32.totalorder %s20, 0
      %p41 = por %p39, %p40
      %p42 = scmp.ne.s32.totalorder %s28, %s29
      %p43 = scmp.eq.s32.totalorder %s21, 1
      %p44 = por %p42, %p43
      %p46 = scmp.ne.s32.totalorder %s29, %s45
      %p47 = scmp.eq.s32.totalorder %s21, 0
      %p48 = por %p46, %p47
      %s50 = sadd.s32 %s49, 1
      %p53 = scmp.eq.s32.totalorder %s15, 1
      %p54 = scmp.ne.s32.totalorder %s49, %s51
      %p55 = scmp.eq.s32.totalorder %s15, 0
      %p56 = por %p54, %p55
      %p57 = scmp.ne.s32.totalorder %s49, %s51
      %p58 = scmp.eq.s32.totalorder %s20, 1
      %p59 = por %p57, %p58
      %p60 = scmp.ne.s32.totalorder %s51, %s52
      %p61 = scmp.eq.s32.totalorder %s20, 0
      %p62 = por %p60, %p61
      %p63 = scmp.ne.s32.totalorder %s51, %s52
      %p64 = scmp.eq.s32.totalorder %s21, 1
      %p65 = por %p63, %p64
      %p67 = scmp.ne.s32.totalorder %s52, %s66
      %p68 = scmp.eq.s32.totalorder %s21, 0
      %p69 = por %p67, %p68
      %s71 = sadd.s32 %s70, 1
      %p74 = scmp.eq.s32.totalorder %s15, 1
      %p75 = scmp.ne.s32.totalorder %s70, %s72
      %p76 = scmp.eq.s32.totalorder %s15, 0
      %p77 = por %p75, %p76
      %p78 = scmp.ne.s32.totalorder %s70, %s72
      %p79 = scmp.eq.s32.totalorder %s20, 1
      %p80 = por %p78, %p79
      %p81 = scmp.ne.s32.totalorder %s72, %s73
      %p82 = scmp.eq.s32.totalorder %s20, 0
      %p83 = por %p81, %p82
      %p84 = scmp.ne.s32.totalorder %s72, %s73
      %p85 = scmp.eq.s32.totalorder %s21, 1
      %p86 = por %p84, %p85
      %p88 = scmp.ne.s32.totalorder %s73, %s87
      %p89 = scmp.eq.s32.totalorder %s21, 0
      %p90 = por %p88, %p89
      %s91 = ssub.s32 %s15, %s22
      %p92 = scmp.eq.s32.totalorder %s91, 0
      %s94 = sadd.s32 %s93, 1
      %s95 = scalar_select %p92, %s93, %s94
      %p98 = pneg %p92
      %p99 = scmp.eq.s32.totalorder %s15, 1
      %p100 = por %p98, %p99
      %p101 = scmp.ne.s32.totalorder %s93, %s96
      %p102 = scmp.eq.s32.totalorder %s15, 0
      %p103 = por %p101, %p102
      %p104 = scmp.ne.s32.totalorder %s93, %s96
      %p105 = scmp.eq.s32.totalorder %s20, 1
      %p106 = por %p104, %p105
      %p107 = scmp.ne.s32.totalorder %s96, %s97
      %p108 = scmp.eq.s32.totalorder %s20, 0
      %p109 = por %p107, %p108
      %p110 = scmp.ne.s32.totalorder %s96, %s97
      %p111 = scmp.eq.s32.totalorder %s21, 1
      %p112 = por %p110, %p111
      %p114 = scmp.ne.s32.totalorder %s97, %s113
      %p115 = scmp.eq.s32.totalorder %s21, 0
      %p116 = por %p114, %p115
      %p117 = scmp.le.s32.totalorder 1, %s15
      %p118 = scmp.lt.s32.totalorder %s15, 3
      %p119 = pnand %p117, %p118
      %p120 = pneg %p119
      // Predicated region
      $region9: #{tpu_custom_call.1} parent=5 // pred_check
        _
      $region10: #{tpu_custom_call.1} parent=5 // pred_check_branch
        %122 = sbr.rel (%p119) target = $region12
      $region11: #{tpu_custom_call.1} parent=5 // pred_region
        %s123 = ssub.s32 %s15, 1
        // Predicated region
        $region13: #{tpu_custom_call.1} parent=11 // pred_check
          %p124 = pneg %p62
        $region14: #{tpu_custom_call.1} parent=11 // pred_check_branch
          %126 = sbr.rel (%p124) target = $region16
        $region15: #{tpu_custom_call.1} parent=11 // pred_region
          _
        $region16: #{tpu_custom_call.1} parent=11 // pred_fallthru
          _
        // Predicated region
        $region17: #{tpu_custom_call.1} parent=11 // pred_check
          %p127 = pneg %p83
        $region18: #{tpu_custom_call.1} parent=11 // pred_check_branch
          %129 = sbr.rel (%p127) target = $region20
        $region19: #{tpu_custom_call.1} parent=11 // pred_region
          _
        $region20: #{tpu_custom_call.1} parent=11 // pred_fallthru
          _
      $region12: #{tpu_custom_call.1} parent=5 // pred_fallthru
        _
      %p130 = scmp.lt.s32.totalorder %s15, 2
      // Predicated region
      $region21: #{tpu_custom_call.1} parent=5 // pred_check
        %p131 = pneg %p130
      $region22: #{tpu_custom_call.1} parent=5 // pred_check_branch
        %133 = sbr.rel (%p131) target = $region24
      $region23: #{tpu_custom_call.1} parent=5 // pred_region
        // Predicated region
        $region25: #{tpu_custom_call.1} parent=23 // pred_check
          %p134 = pneg %p35
        $region26: #{tpu_custom_call.1} parent=23 // pred_check_branch
          %136 = sbr.rel (%p134) target = $region28
        $region27: #{tpu_custom_call.1} parent=23 // pred_region
          %s137 = sand.u32 %s25, 1
          %s138 = scalar_lea.sflag [#allocation3], %s137
          %s139 = sand.u32 %s25, 1
          %s140 = smul.addr %s139, 512
          %s141 = scalar_lea.vmem [#allocation2], %s140
          %s143 = ssub.s32 8192, 8192
          %144 = vsyncadd %s138, %s143
          %s145 = smul.addr %s15, 64
          %s146 = smul.addr %s145, 128
          %s147 = scalar_lea.hbm %s0, %s146
          %s148 = sshll.u32 %s141, 4
          %s149 = int_to_ptr.vmem [resolvable:$true] %s148
          %154 = dma.hbm_to_vmem [thread:$0]  %s147, 8192, %s149, %s138, 2048, 2048, 128
        $region28: #{tpu_custom_call.1} parent=23 // pred_fallthru
          _
      $region24: #{tpu_custom_call.1} parent=5 // pred_fallthru
        _
      %p155 = scmp.le.s32.totalorder 1, %s15
      %p156 = scmp.lt.s32.totalorder %s15, 3
      %p157 = pnand %p155, %p156
      %p158 = pneg %p157
      // Predicated region
      $region29: #{tpu_custom_call.1} parent=5 // pred_check
        _
      $region30: #{tpu_custom_call.1} parent=5 // pred_check_branch
        %160 = sbr.rel (%p157) target = $region32
      $region31: #{tpu_custom_call.1} parent=5 // pred_region
        %s161 = ssub.s32 %s15, 1
        %s162 = sand.u32 %s28, 1
        %s163 = scalar_lea.sflag [#allocation3], %s162
        %s164 = sand.u32 %s28, 1
        %s165 = smul.addr %s164, 512
        %s166 = scalar_lea.vmem [#allocation2], %s165
        // Predicated region
        $region33: #{tpu_custom_call.1} parent=31 // pred_check
          %p167 = pneg %p41
        $region34: #{tpu_custom_call.1} parent=31 // pred_check_branch
          %169 = sbr.rel (%p167) target = $region36
        $region35: #{tpu_custom_call.1} parent=31 // pred_region
          %170 = dma.done %s163, 8192
        $region36: #{tpu_custom_call.1} parent=31 // pred_fallthru
          _
        %s171 = sand.u32 %s28, 1
        %s172 = scalar_lea.sflag [#allocation3], %s171
        %s173 = sand.u32 %s28, 1
        %s174 = smul.addr %s173, 512
        %s175 = scalar_lea.vmem [#allocation2], %s174
        %p176 = pneg %p41
        %p177 = pneg %p38
        %p178 = pneg %p62
        %p179 = pneg %p59
        %p180 = pneg %p83
        %p181 = pneg %p80
        %p182 = pneg %p109
        %p183 = pneg %p106
        %s184 = sand.u32 %s96, 1
        %s185 = scalar_lea.sflag [#allocation4], %s184
        %s186 = sand.u32 %s96, 1
        %s187 = smul.addr %s186, 512
        %s188 = scalar_lea.vmem [#allocation5], %s187
        %v189 = vld [vmem:[%s166] sm:$0xff]
        %v190 = vld [vmem:[%s166 + $0x8] sm:$0xff]
        %v191 = vld [vmem:[%s166 + $0x10] sm:$0xff]
        %v192 = vld [vmem:[%s166 + $0x18] sm:$0xff]
        %v193 = vld [vmem:[%s166 + $0x20] sm:$0xff]
        %v194 = vld [vmem:[%s166 + $0x28] sm:$0xff]
        %v195 = vld [vmem:[%s166 + $0x30] sm:$0xff]
        %v196 = vld [vmem:[%s166 + $0x38] sm:$0xff]
        %v197 = vld [vmem:[%s166 + $0x80] sm:$0xff]
        %v198 = vld [vmem:[%s166 + $0x88] sm:$0xff]
        %v199 = vld [vmem:[%s166 + $0x90] sm:$0xff]
        %v200 = vld [vmem:[%s166 + $0x98] sm:$0xff]
        %v201 = vld [vmem:[%s166 + $0xa0] sm:$0xff]
        %v202 = vld [vmem:[%s166 + $0xa8] sm:$0xff]
        %v203 = vld [vmem:[%s166 + $0xb0] sm:$0xff]
        %v204 = vld [vmem:[%s166 + $0xb8] sm:$0xff]
        %v205 = vld [vmem:[%s166 + $0x100] sm:$0xff]
        %v206 = vld [vmem:[%s166 + $0x108] sm:$0xff]
        %v207 = vld [vmem:[%s166 + $0x110] sm:$0xff]
        %v208 = vld [vmem:[%s166 + $0x118] sm:$0xff]
        %v209 = vld [vmem:[%s166 + $0x120] sm:$0xff]
        %v210 = vld [vmem:[%s166 + $0x128] sm:$0xff]
        %v211 = vld [vmem:[%s166 + $0x130] sm:$0xff]
        %v212 = vld [vmem:[%s166 + $0x138] sm:$0xff]
        %v213 = vld [vmem:[%s166 + $0x180] sm:$0xff]
        %v214 = vld [vmem:[%s166 + $0x188] sm:$0xff]
        %v215 = vld [vmem:[%s166 + $0x190] sm:$0xff]
        %v216 = vld [vmem:[%s166 + $0x198] sm:$0xff]
        %v217 = vld [vmem:[%s166 + $0x1a0] sm:$0xff]
        %v218 = vld [vmem:[%s166 + $0x1a8] sm:$0xff]
        %v219 = vld [vmem:[%s166 + $0x1b0] sm:$0xff]
        %v220 = vld [vmem:[%s166 + $0x1b8] sm:$0xff]
        %v221 = vadd.f32 %v189, 0.0
        %v222 = vadd.f32 %v197, 0.0
        %v223 = vadd.f32 %v205, 0.0
        %v224 = vadd.f32 %v213, 0.0
        %v225 = vadd.f32 %v221, %v190
        %v226 = vadd.f32 %v222, %v198
        %v227 = vadd.f32 %v223, %v206
        %v228 = vadd.f32 %v224, %v214
        %v229 = vmax.f32 %v189, %v190
        %v230 = vmax.f32 %v197, %v198
        %v231 = vmax.f32 %v205, %v206
        %v232 = vmax.f32 %v213, %v214
        %v233 = vadd.f32 %v225, %v191
        %v234 = vadd.f32 %v226, %v199
        %v235 = vadd.f32 %v227, %v207
        %v236 = vadd.f32 %v228, %v215
        %v237 = vmax.f32 %v229, %v191
        %v238 = vmax.f32 %v230, %v199
        %v239 = vmax.f32 %v231, %v207
        %v240 = vmax.f32 %v232, %v215
        %v241 = vadd.f32 %v233, %v192
        %v242 = vadd.f32 %v234, %v200
        %v243 = vadd.f32 %v235, %v208
        %v244 = vadd.f32 %v236, %v216
        %v245 = vmax.f32 %v237, %v192
        %v246 = vmax.f32 %v238, %v200
        %v247 = vmax.f32 %v239, %v208
        %v248 = vmax.f32 %v240, %v216
        %v249 = vadd.f32 %v241, %v193
        %v250 = vadd.f32 %v242, %v201
        %v251 = vadd.f32 %v243, %v209
        %v252 = vadd.f32 %v244, %v217
        %v253 = vmax.f32 %v245, %v193
        %v254 = vmax.f32 %v246, %v201
        %v255 = vmax.f32 %v247, %v209
        %v256 = vmax.f32 %v248, %v217
        %v257 = vadd.f32 %v249, %v194
        %v258 = vadd.f32 %v250, %v202
        %v259 = vadd.f32 %v251, %v210
        %v260 = vadd.f32 %v252, %v218
        %v261 = vmax.f32 %v253, %v194
        %v262 = vmax.f32 %v254, %v202
        %v263 = vmax.f32 %v255, %v210
        %v264 = vmax.f32 %v256, %v218
        %v265 = vadd.f32 %v257, %v195
        %v266 = vadd.f32 %v258, %v203
        %v267 = vadd.f32 %v259, %v211
        %v268 = vadd.f32 %v260, %v219
        %v269 = vmax.f32 %v261, %v195
        %v270 = vmax.f32 %v262, %v203
        %v271 = vmax.f32 %v263, %v211
        %v272 = vmax.f32 %v264, %v219
        %v273 = vadd.f32 %v265, %v196
        %v274 = vadd.f32 %v266, %v204
        %v275 = vadd.f32 %v267, %v212
        %v276 = vadd.f32 %v268, %v220
        %v277 = vmax.f32 %v269, %v196
        %v278 = vmax.f32 %v270, %v204
        %v279 = vmax.f32 %v271, %v212
        %v280 = vmax.f32 %v272, %v220
        %s281 = scalar_lea.vmem %s166, 64 [#allocation2]
        %v282 = vld [vmem:[%s281] sm:$0xff]
        %v283 = vld [vmem:[%s281 + $0x8] sm:$0xff]
        %v284 = vld [vmem:[%s281 + $0x10] sm:$0xff]
        %v285 = vld [vmem:[%s281 + $0x18] sm:$0xff]
        %v286 = vld [vmem:[%s281 + $0x20] sm:$0xff]
        %v287 = vld [vmem:[%s281 + $0x28] sm:$0xff]
        %v288 = vld [vmem:[%s281 + $0x30] sm:$0xff]
        %v289 = vld [vmem:[%s281 + $0x38] sm:$0xff]
        %v290 = vld [vmem:[%s281 + $0x80] sm:$0xff]
        %v291 = vld [vmem:[%s281 + $0x88] sm:$0xff]
        %v292 = vld [vmem:[%s281 + $0x90] sm:$0xff]
        %v293 = vld [vmem:[%s281 + $0x98] sm:$0xff]
        %v294 = vld [vmem:[%s281 + $0xa0] sm:$0xff]
        %v295 = vld [vmem:[%s281 + $0xa8] sm:$0xff]
        %v296 = vld [vmem:[%s281 + $0xb0] sm:$0xff]
        %v297 = vld [vmem:[%s281 + $0xb8] sm:$0xff]
        %v298 = vld [vmem:[%s281 + $0x100] sm:$0xff]
        %v299 = vld [vmem:[%s281 + $0x108] sm:$0xff]
        %v300 = vld [vmem:[%s281 + $0x110] sm:$0xff]
        %v301 = vld [vmem:[%s281 + $0x118] sm:$0xff]
        %v302 = vld [vmem:[%s281 + $0x120] sm:$0xff]
        %v303 = vld [vmem:[%s281 + $0x128] sm:$0xff]
        %v304 = vld [vmem:[%s281 + $0x130] sm:$0xff]
        %v305 = vld [vmem:[%s281 + $0x138] sm:$0xff]
        %v306 = vld [vmem:[%s281 + $0x180] sm:$0xff]
        %v307 = vld [vmem:[%s281 + $0x188] sm:$0xff]
        %v308 = vld [vmem:[%s281 + $0x190] sm:$0xff]
        %v309 = vld [vmem:[%s281 + $0x198] sm:$0xff]
        %v310 = vld [vmem:[%s281 + $0x1a0] sm:$0xff]
        %v311 = vld [vmem:[%s281 + $0x1a8] sm:$0xff]
        %v312 = vld [vmem:[%s281 + $0x1b0] sm:$0xff]
        %v313 = vld [vmem:[%s281 + $0x1b8] sm:$0xff]
        %v314 = vadd.f32 %v273, %v282
        %v315 = vadd.f32 %v274, %v290
        %v316 = vadd.f32 %v275, %v298
        %v317 = vadd.f32 %v276, %v306
        %v318 = vmax.f32 %v277, %v282
        %v319 = vmax.f32 %v278, %v290
        %v320 = vmax.f32 %v279, %v298
        %v321 = vmax.f32 %v280, %v306
        %v322 = vadd.f32 %v314, %v283
        %v323 = vadd.f32 %v315, %v291
        %v324 = vadd.f32 %v316, %v299
        %v325 = vadd.f32 %v317, %v307
        %v326 = vmax.f32 %v318, %v283
        %v327 = vmax.f32 %v319, %v291
        %v328 = vmax.f32 %v320, %v299
        %v329 = vmax.f32 %v321, %v307
        %v330 = vadd.f32 %v322, %v284
        %v331 = vadd.f32 %v323, %v292
        %v332 = vadd.f32 %v324, %v300
        %v333 = vadd.f32 %v325, %v308
        %v334 = vmax.f32 %v326, %v284
        %v335 = vmax.f32 %v327, %v292
        %v336 = vmax.f32 %v328, %v300
        %v337 = vmax.f32 %v329, %v308
        %v338 = vadd.f32 %v330, %v285
        %v339 = vadd.f32 %v331, %v293
        %v340 = vadd.f32 %v332, %v301
        %v341 = vadd.f32 %v333, %v309
        %v342 = vmax.f32 %v334, %v285
        %v343 = vmax.f32 %v335, %v293
        %v344 = vmax.f32 %v336, %v301
        %v345 = vmax.f32 %v337, %v309
        %v346 = vadd.f32 %v338, %v286
        %v347 = vadd.f32 %v339, %v294
        %v348 = vadd.f32 %v340, %v302
        %v349 = vadd.f32 %v341, %v310
        %v350 = vmax.f32 %v342, %v286
        %v351 = vmax.f32 %v343, %v294
        %v352 = vmax.f32 %v344, %v302
        %v353 = vmax.f32 %v345, %v310
        %v354 = vadd.f32 %v346, %v287
        %v355 = vadd.f32 %v347, %v295
        %v356 = vadd.f32 %v348, %v303
        %v357 = vadd.f32 %v349, %v311
        %v358 = vmax.f32 %v350, %v287
        %v359 = vmax.f32 %v351, %v295
        %v360 = vmax.f32 %v352, %v303
        %v361 = vmax.f32 %v353, %v311
        %v362 = vadd.f32 %v354, %v288
        %v363 = vadd.f32 %v355, %v296
        %v364 = vadd.f32 %v356, %v304
        %v365 = vadd.f32 %v357, %v312
        %v366 = vmax.f32 %v358, %v288
        %v367 = vmax.f32 %v359, %v296
        %v368 = vmax.f32 %v360, %v304
        %v369 = vmax.f32 %v361, %v312
        %v370 = vadd.f32 %v362, %v289
        %v371 = vadd.f32 %v363, %v297
        %v372 = vadd.f32 %v364, %v305
        %v373 = vadd.f32 %v365, %v313
        %v374 = vmax.f32 %v366, %v289
        %v375 = vmax.f32 %v367, %v297
        %v376 = vmax.f32 %v368, %v305
        %v377 = vmax.f32 %v369, %v313
        %378 = vadd.xlane.f32.xlu0 %v370
        %v379 = vpop.xlane.xlu0 %378
        %380 = vadd.xlane.f32.xlu0 %v371
        %v381 = vpop.xlane.xlu0 %380
        %382 = vadd.xlane.f32.xlu0 %v372
        %v383 = vpop.xlane.xlu0 %382
        %384 = vadd.xlane.f32.xlu0 %v373
        %v385 = vpop.xlane.xlu0 %384
        %386 = vmax.xlane.f32.xlu0 %v374
        %v387 = vpop.xlane.xlu0 %386
        %388 = vmax.xlane.f32.xlu0 %v375
        %v389 = vpop.xlane.xlu0 %388
        %390 = vmax.xlane.f32.xlu0 %v376
        %v391 = vpop.xlane.xlu0 %390
        %392 = vmax.xlane.f32.xlu0 %v377
        %v393 = vpop.xlane.xlu0 %392
        %v394 = vmul.f32 %v379, 0.00048828125
        %v395 = vmul.f32 %v381, 0.00048828125
        %v396 = vmul.f32 %v383, 0.00048828125
        %v397 = vmul.f32 %v385, 0.00048828125
        %v398 = vld [vmem:[%s1] sm:$0xff]
        %v399 = vld [vmem:[%s1 + $0x8] sm:$0xff]
        %v400 = vld [vmem:[%s1 + $0x10] sm:$0xff]
        %v401 = vld [vmem:[%s1 + $0x18] sm:$0xff]
        %v402 = vld [vmem:[%s2] sm:$0xff]
        %v403 = vld [vmem:[%s2 + $0x8] sm:$0xff]
        %v404 = vld [vmem:[%s2 + $0x10] sm:$0xff]
        %v405 = vld [vmem:[%s2 + $0x18] sm:$0xff]
        %v406 = vmul.f32 %v398, %v394
        %v407 = vmul.f32 %v399, %v395
        %v408 = vmul.f32 %v400, %v396
        %v409 = vmul.f32 %v401, %v397
        %vm410 = vcmask 15360
        %v411 = vsel %vm410, %v406, 0.0
        %v412 = vsel %vm410, %v407, 0.0
        %v413 = vadd.f32 %v411, %v412
        %v414 = vsel %vm410, %v408, 0.0
        %v415 = vadd.f32 %v413, %v414
        %v416 = vsel %vm410, %v409, 0.0
        %v417 = vadd.f32 %v415, %v416
        %v418 = vrot.slane %v417, 4
        %v419 = vadd.f32 %v417, %v418
        %v420 = vrot.slane %v419, 2
        %v421 = vadd.f32 %v419, %v420
        %v422 = vrot.slane %v421, 1
        %v423 = vadd.f32 %v421, %v422
        %v424 = vmax.f32 %v423, 0.0
        %v425 = vmul.f32 %v402, %v424
        %v426 = vmul.f32 %v403, %v424
        %v427 = vmul.f32 %v404, %v424
        %v428 = vmul.f32 %v405, %v424
        %v429 = vsel %vm410, %v425, 0.0
        %430 = vadd.xlane.f32.xlu0 %v429
        %v431 = vpop.xlane.xlu0 %430
        %v432 = vsel %vm410, %v426, 0.0
        %433 = vadd.xlane.f32.xlu0 %v432
        %v434 = vpop.xlane.xlu0 %433
        %v435 = vsel %vm410, %v427, 0.0
        %436 = vadd.xlane.f32.xlu0 %v435
        %v437 = vpop.xlane.xlu0 %436
        %v438 = vsel %vm410, %v428, 0.0
        %439 = vadd.xlane.f32.xlu0 %v438
        %v440 = vpop.xlane.xlu0 %439
        %v441 = vmul.f32 %v398, %v387
        %v442 = vmul.f32 %v399, %v389
        %v443 = vmul.f32 %v400, %v391
        %v444 = vmul.f32 %v401, %v393
        %v445 = vsel %vm410, %v441, 0.0
        %v446 = vsel %vm410, %v442, 0.0
        %v447 = vadd.f32 %v445, %v446
        %v448 = vsel %vm410, %v443, 0.0
        %v449 = vadd.f32 %v447, %v448
        %v450 = vsel %vm410, %v444, 0.0
        %v451 = vadd.f32 %v449, %v450
        %v452 = vrot.slane %v451, 4
        %v453 = vadd.f32 %v451, %v452
        %v454 = vrot.slane %v453, 2
        %v455 = vadd.f32 %v453, %v454
        %v456 = vrot.slane %v455, 1
        %v457 = vadd.f32 %v455, %v456
        %v458 = vmax.f32 %v457, 0.0
        %v459 = vmul.f32 %v402, %v458
        %v460 = vmul.f32 %v403, %v458
        %v461 = vmul.f32 %v404, %v458
        %v462 = vmul.f32 %v405, %v458
        %v463 = vsel %vm410, %v459, 0.0
        %464 = vadd.xlane.f32.xlu0 %v463
        %v465 = vpop.xlane.xlu0 %464
        %v466 = vsel %vm410, %v460, 0.0
        %467 = vadd.xlane.f32.xlu0 %v466
        %v468 = vpop.xlane.xlu0 %467
        %v469 = vsel %vm410, %v461, 0.0
        %470 = vadd.xlane.f32.xlu0 %v469
        %v471 = vpop.xlane.xlu0 %470
        %v472 = vsel %vm410, %v462, 0.0
        %473 = vadd.xlane.f32.xlu0 %v472
        %v474 = vpop.xlane.xlu0 %473
        %v475 = vadd.f32 %v431, %v465
        %v476 = vadd.f32 %v434, %v468
        %v477 = vadd.f32 %v437, %v471
        %v478 = vadd.f32 %v440, %v474
        %v479 = vxor.u32 %v475, 2147483648
        %v480 = vxor.u32 %v476, 2147483648
        %v481 = vxor.u32 %v477, 2147483648
        %v482 = vxor.u32 %v478, 2147483648
        %v483 = vmul.f32 %v479, 1.442695
        %v484 = vpow.pop %v483
        %v485 = vmul.f32 %v480, 1.442695
        %v486 = vpow.pop %v485
        %v487 = vmul.f32 %v481, 1.442695
        %v488 = vpow.pop %v487
        %v489 = vmul.f32 %v482, 1.442695
        %v490 = vpow.pop %v489
        %v491 = vadd.f32 %v484, 1.0
        %v492 = vadd.f32 %v486, 1.0
        %v493 = vadd.f32 %v488, 1.0
        %v494 = vadd.f32 %v490, 1.0
        %v495 = vrcp.pop %v491
        %v496 = vmul.f32 1.0, %v495
        %v497 = vrcp.pop %v492
        %v498 = vmul.f32 1.0, %v497
        %v499 = vrcp.pop %v493
        %v500 = vmul.f32 1.0, %v499
        %v501 = vrcp.pop %v494
        %v502 = vmul.f32 1.0, %v501
        %v503 = vmul.f32 %v496, %v189
        %v504 = vmul.f32 %v496, %v190
        %v505 = vmul.f32 %v496, %v191
        %v506 = vmul.f32 %v496, %v192
        %v507 = vmul.f32 %v496, %v193
        %v508 = vmul.f32 %v496, %v194
        %v509 = vmul.f32 %v496, %v195
        %v510 = vmul.f32 %v496, %v196
        %v511 = vmul.f32 %v498, %v197
        %v512 = vmul.f32 %v498, %v198
        %v513 = vmul.f32 %v498, %v199
        %v514 = vmul.f32 %v498, %v200
        %v515 = vmul.f32 %v498, %v201
        %v516 = vmul.f32 %v498, %v202
        %v517 = vmul.f32 %v498, %v203
        %v518 = vmul.f32 %v498, %v204
        %v519 = vmul.f32 %v500, %v205
        %v520 = vmul.f32 %v500, %v206
        %v521 = vmul.f32 %v500, %v207
        %v522 = vmul.f32 %v500, %v208
        %v523 = vmul.f32 %v500, %v209
        %v524 = vmul.f32 %v500, %v210
        %v525 = vmul.f32 %v500, %v211
        %v526 = vmul.f32 %v500, %v212
        %v527 = vmul.f32 %v502, %v213
        %v528 = vmul.f32 %v502, %v214
        %v529 = vmul.f32 %v502, %v215
        %v530 = vmul.f32 %v502, %v216
        %v531 = vmul.f32 %v502, %v217
        %v532 = vmul.f32 %v502, %v218
        %v533 = vmul.f32 %v502, %v219
        %v534 = vmul.f32 %v502, %v220
        %535 = vst [vmem:[%s188] sm:$0xff] %v503
        %536 = vst [vmem:[%s188 + $0x8] sm:$0xff] %v504
        %537 = vst [vmem:[%s188 + $0x10] sm:$0xff] %v505
        %538 = vst [vmem:[%s188 + $0x18] sm:$0xff] %v506
        %539 = vst [vmem:[%s188 + $0x20] sm:$0xff] %v507
        %540 = vst [vmem:[%s188 + $0x28] sm:$0xff] %v508
        %541 = vst [vmem:[%s188 + $0x30] sm:$0xff] %v509
        %542 = vst [vmem:[%s188 + $0x38] sm:$0xff] %v510
        %543 = vst [vmem:[%s188 + $0x80] sm:$0xff] %v511
        %544 = vst [vmem:[%s188 + $0x88] sm:$0xff] %v512
        %545 = vst [vmem:[%s188 + $0x90] sm:$0xff] %v513
        %546 = vst [vmem:[%s188 + $0x98] sm:$0xff] %v514
        %547 = vst [vmem:[%s188 + $0xa0] sm:$0xff] %v515
        %548 = vst [vmem:[%s188 + $0xa8] sm:$0xff] %v516
        %549 = vst [vmem:[%s188 + $0xb0] sm:$0xff] %v517
        %550 = vst [vmem:[%s188 + $0xb8] sm:$0xff] %v518
        %551 = vst [vmem:[%s188 + $0x100] sm:$0xff] %v519
        %552 = vst [vmem:[%s188 + $0x108] sm:$0xff] %v520
        %553 = vst [vmem:[%s188 + $0x110] sm:$0xff] %v521
        %554 = vst [vmem:[%s188 + $0x118] sm:$0xff] %v522
        %555 = vst [vmem:[%s188 + $0x120] sm:$0xff] %v523
        %556 = vst [vmem:[%s188 + $0x128] sm:$0xff] %v524
        %557 = vst [vmem:[%s188 + $0x130] sm:$0xff] %v525
        %558 = vst [vmem:[%s188 + $0x138] sm:$0xff] %v526
        %559 = vst [vmem:[%s188 + $0x180] sm:$0xff] %v527
        %560 = vst [vmem:[%s188 + $0x188] sm:$0xff] %v528
        %561 = vst [vmem:[%s188 + $0x190] sm:$0xff] %v529
        %562 = vst [vmem:[%s188 + $0x198] sm:$0xff] %v530
        %563 = vst [vmem:[%s188 + $0x1a0] sm:$0xff] %v531
        %564 = vst [vmem:[%s188 + $0x1a8] sm:$0xff] %v532
        %565 = vst [vmem:[%s188 + $0x1b0] sm:$0xff] %v533
        %566 = vst [vmem:[%s188 + $0x1b8] sm:$0xff] %v534
        %v567 = vld [vmem:[%s281] sm:$0xff]
        %v568 = vld [vmem:[%s281 + $0x8] sm:$0xff]
        %v569 = vld [vmem:[%s281 + $0x10] sm:$0xff]
        %v570 = vld [vmem:[%s281 + $0x18] sm:$0xff]
        %v571 = vld [vmem:[%s281 + $0x20] sm:$0xff]
        %v572 = vld [vmem:[%s281 + $0x28] sm:$0xff]
        %v573 = vld [vmem:[%s281 + $0x30] sm:$0xff]
        %v574 = vld [vmem:[%s281 + $0x38] sm:$0xff]
        %v575 = vld [vmem:[%s281 + $0x80] sm:$0xff]
        %v576 = vld [vmem:[%s281 + $0x88] sm:$0xff]
        %v577 = vld [vmem:[%s281 + $0x90] sm:$0xff]
        %v578 = vld [vmem:[%s281 + $0x98] sm:$0xff]
        %v579 = vld [vmem:[%s281 + $0xa0] sm:$0xff]
        %v580 = vld [vmem:[%s281 + $0xa8] sm:$0xff]
        %v581 = vld [vmem:[%s281 + $0xb0] sm:$0xff]
        %v582 = vld [vmem:[%s281 + $0xb8] sm:$0xff]
        %v583 = vld [vmem:[%s281 + $0x100] sm:$0xff]
        %v584 = vld [vmem:[%s281 + $0x108] sm:$0xff]
        %v585 = vld [vmem:[%s281 + $0x110] sm:$0xff]
        %v586 = vld [vmem:[%s281 + $0x118] sm:$0xff]
        %v587 = vld [vmem:[%s281 + $0x120] sm:$0xff]
        %v588 = vld [vmem:[%s281 + $0x128] sm:$0xff]
        %v589 = vld [vmem:[%s281 + $0x130] sm:$0xff]
        %v590 = vld [vmem:[%s281 + $0x138] sm:$0xff]
        %v591 = vld [vmem:[%s281 + $0x180] sm:$0xff]
        %v592 = vld [vmem:[%s281 + $0x188] sm:$0xff]
        %v593 = vld [vmem:[%s281 + $0x190] sm:$0xff]
        %v594 = vld [vmem:[%s281 + $0x198] sm:$0xff]
        %v595 = vld [vmem:[%s281 + $0x1a0] sm:$0xff]
        %v596 = vld [vmem:[%s281 + $0x1a8] sm:$0xff]
        %v597 = vld [vmem:[%s281 + $0x1b0] sm:$0xff]
        %v598 = vld [vmem:[%s281 + $0x1b8] sm:$0xff]
        %v599 = vmul.f32 %v496, %v567
        %v600 = vmul.f32 %v496, %v568
        %v601 = vmul.f32 %v496, %v569
        %v602 = vmul.f32 %v496, %v570
        %v603 = vmul.f32 %v496, %v571
        %v604 = vmul.f32 %v496, %v572
        %v605 = vmul.f32 %v496, %v573
        %v606 = vmul.f32 %v496, %v574
        %v607 = vmul.f32 %v498, %v575
        %v608 = vmul.f32 %v498, %v576
        %v609 = vmul.f32 %v498, %v577
        %v610 = vmul.f32 %v498, %v578
        %v611 = vmul.f32 %v498, %v579
        %v612 = vmul.f32 %v498, %v580
        %v613 = vmul.f32 %v498, %v581
        %v614 = vmul.f32 %v498, %v582
        %v615 = vmul.f32 %v500, %v583
        %v616 = vmul.f32 %v500, %v584
        %v617 = vmul.f32 %v500, %v585
        %v618 = vmul.f32 %v500, %v586
        %v619 = vmul.f32 %v500, %v587
        %v620 = vmul.f32 %v500, %v588
        %v621 = vmul.f32 %v500, %v589
        %v622 = vmul.f32 %v500, %v590
        %v623 = vmul.f32 %v502, %v591
        %v624 = vmul.f32 %v502, %v592
        %v625 = vmul.f32 %v502, %v593
        %v626 = vmul.f32 %v502, %v594
        %v627 = vmul.f32 %v502, %v595
        %v628 = vmul.f32 %v502, %v596
        %v629 = vmul.f32 %v502, %v597
        %v630 = vmul.f32 %v502, %v598
        %s631 = scalar_lea.vmem %s188, 64 [#allocation5]
        %632 = vst [vmem:[%s631] sm:$0xff] %v599
        %633 = vst [vmem:[%s631 + $0x8] sm:$0xff] %v600
        %634 = vst [vmem:[%s631 + $0x10] sm:$0xff] %v601
        %635 = vst [vmem:[%s631 + $0x18] sm:$0xff] %v602
        %636 = vst [vmem:[%s631 + $0x20] sm:$0xff] %v603
        %637 = vst [vmem:[%s631 + $0x28] sm:$0xff] %v604
        %638 = vst [vmem:[%s631 + $0x30] sm:$0xff] %v605
        %639 = vst [vmem:[%s631 + $0x38] sm:$0xff] %v606
        %640 = vst [vmem:[%s631 + $0x80] sm:$0xff] %v607
        %641 = vst [vmem:[%s631 + $0x88] sm:$0xff] %v608
        %642 = vst [vmem:[%s631 + $0x90] sm:$0xff] %v609
        %643 = vst [vmem:[%s631 + $0x98] sm:$0xff] %v610
        %644 = vst [vmem:[%s631 + $0xa0] sm:$0xff] %v611
        %645 = vst [vmem:[%s631 + $0xa8] sm:$0xff] %v612
        %646 = vst [vmem:[%s631 + $0xb0] sm:$0xff] %v613
        %647 = vst [vmem:[%s631 + $0xb8] sm:$0xff] %v614
        %648 = vst [vmem:[%s631 + $0x100] sm:$0xff] %v615
        %649 = vst [vmem:[%s631 + $0x108] sm:$0xff] %v616
        %650 = vst [vmem:[%s631 + $0x110] sm:$0xff] %v617
        %651 = vst [vmem:[%s631 + $0x118] sm:$0xff] %v618
        %652 = vst [vmem:[%s631 + $0x120] sm:$0xff] %v619
        %653 = vst [vmem:[%s631 + $0x128] sm:$0xff] %v620
        %654 = vst [vmem:[%s631 + $0x130] sm:$0xff] %v621
        %655 = vst [vmem:[%s631 + $0x138] sm:$0xff] %v622
        %656 = vst [vmem:[%s631 + $0x180] sm:$0xff] %v623
        %657 = vst [vmem:[%s631 + $0x188] sm:$0xff] %v624
        %658 = vst [vmem:[%s631 + $0x190] sm:$0xff] %v625
        %659 = vst [vmem:[%s631 + $0x198] sm:$0xff] %v626
        %660 = vst [vmem:[%s631 + $0x1a0] sm:$0xff] %v627
        %661 = vst [vmem:[%s631 + $0x1a8] sm:$0xff] %v628
        %662 = vst [vmem:[%s631 + $0x1b0] sm:$0xff] %v629
        %663 = vst [vmem:[%s631 + $0x1b8] sm:$0xff] %v630
        %s664 = sand.u32 %s96, 1
        %s665 = scalar_lea.sflag [#allocation4], %s664
        %s666 = sand.u32 %s96, 1
        %s667 = smul.addr %s666, 512
        %s668 = scalar_lea.vmem [#allocation5], %s667
        // Predicated region
        $region37: #{tpu_custom_call.1} parent=31 // pred_check
          %p669 = pneg %p106
        $region38: #{tpu_custom_call.1} parent=31 // pred_check_branch
          %671 = sbr.rel (%p669) target = $region40
        $region39: #{tpu_custom_call.1} parent=31 // pred_region
          %s673 = ssub.s32 8192, 8192
          %674 = vsyncadd %s665, %s673
          %s675 = smul.addr %s20, 64
          %s676 = smul.addr %s675, 128
          %s677 = scalar_lea.hbm %s3, %s676
          %s678 = sshll.u32 %s668, 4
          %s679 = int_to_ptr.vmem [resolvable:$true] %s678
          %684 = dma.vmem_to_hbm [thread:$0]  %s679, 8192, %s677, %s665, 2048, 2048, 128
        $region40: #{tpu_custom_call.1} parent=31 // pred_fallthru
          _
      $region32: #{tpu_custom_call.1} parent=5 // pred_fallthru
        _
      %p685 = scmp.le.s32.totalorder 2, %s15
      // Predicated region
      $region41: #{tpu_custom_call.1} parent=5 // pred_check
        %p686 = pneg %p685
      $region42: #{tpu_custom_call.1} parent=5 // pred_check_branch
        %688 = sbr.rel (%p686) target = $region44
      $region43: #{tpu_custom_call.1} parent=5 // pred_region
        %s689 = ssub.s32 %s15, 2
        // Predicated region
        $region45: #{tpu_custom_call.1} parent=43 // pred_check
          %p690 = pneg %p112
        $region46: #{tpu_custom_call.1} parent=43 // pred_check_branch
          %692 = sbr.rel (%p690) target = $region48
        $region47: #{tpu_custom_call.1} parent=43 // pred_region
          %s693 = sand.u32 %s97, 1
          %s694 = scalar_lea.sflag [#allocation4], %s693
          %s695 = sand.u32 %s97, 1
          %s696 = smul.addr %s695, 512
          %s697 = scalar_lea.vmem [#allocation5], %s696
          %698 = dma.done %s694, 8192
        $region48: #{tpu_custom_call.1} parent=43 // pred_fallthru
          _
      $region44: #{tpu_custom_call.1} parent=5 // pred_fallthru
        _
    $region6: #{tpu_custom_call.1} parent=1 // loop_footer
      %s19 = sadd.s32 1, %s15
    $region7: #{tpu_custom_call.1} parent=1 // loop_footer_branch
      %14 = sbr.rel target = $region3
    $region8: #{tpu_custom_call.1} parent=1 // loop_exit
      _
    %699 = vsyncpa [#allocation3], 1
    %s700 = scalar_lea.sflag [#allocation3], 1
    %701 = vsyncpa %s700, 1
    %702 = vsyncpa [#allocation4], 1
    %s703 = scalar_lea.sflag [#allocation4], 1
    %704 = vsyncpa %s703, 1

</llo_original>
